<compile_context>
chip_gen: v7x
topology: tpu7x:2x2x1
jax: 0.10.0
libtpu: 0.0.40
codegen_flags: <defaults>
</compile_context>

<pallas_src>
import functools

import jax
import jax.numpy as jnp
from jax.experimental import pallas as pl
from jax.experimental.pallas import tpu as pltpu

_LANE = 128     # lane width (last dim)
_SUBLANE = 8    # f32 sublane width (second-to-last dim)


def _round_up(x: int, m: int) -> int:
    return ((x + m - 1) // m) * m


def _make_mlp_kernel(num_hidden_layers: int, n_output: int):
    """Fused MLP kernel: hidden Linear+ReLU layers, output Linear, log_softmax."""

    def kernel(x_ref, *refs):
        # refs = (W0, b0, W1, b1, ..., W_out, b_out, out_ref)
        out_ref = refs[-1]
        params = refs[:-1]

        h = x_ref[...]  # (TB, in_pad) bf16, already lane-padded

        # Hidden layers: Linear -> ReLU -> Dropout (identity in eval mode).
        for i in range(num_hidden_layers):
            w = params[2 * i][...]        # (in_pad, out_pad) bf16 (pre-transposed)
            b = params[2 * i + 1][...]    # (1, out_pad) f32
            a = jnp.dot(h, w, preferred_element_type=jnp.float32) + b  # MXU, f32 acc
            a = jnp.maximum(a, 0.0)       # ReLU on the VPU
            # TODO(synk): training-mode dropout not implemented (eval-mode identity).
            h = a.astype(jnp.bfloat16)    # bf16 feed for the next MXU pass

        # Output layer.
        w_out = params[2 * num_hidden_layers][...]      # (hid_pad, out_pad) bf16
        b_out = params[2 * num_hidden_layers + 1][...]  # (1, out_pad) f32
        logits = jnp.dot(h, w_out, preferred_element_type=jnp.float32) + b_out

        # log_softmax along the feature axis, masking the padded lanes so the
        # padded-to-128 output slab does not change the result.
        lane = jax.lax.broadcasted_iota(jnp.int32, logits.shape, 1)
        valid = lane < n_output
        masked = jnp.where(valid, logits, jnp.float32(-1e30))
        m = jnp.max(masked, axis=1, keepdims=True)
        shifted = masked - m
        s = jnp.sum(jnp.where(valid, jnp.exp(shifted), 0.0), axis=1, keepdims=True)
        # Full-lane (unmasked) store; padded lanes hold garbage and are sliced
        # off in the wrapper.
        out_ref[...] = (shifted - jnp.log(s)).astype(out_ref.dtype)

    return kernel


@functools.partial(
    jax.jit, static_argnames=("num_hidden_layers", "n_output", "block_batch"))
def mlp_forward(x, padded_params, *, num_hidden_layers, n_output, block_batch=256):
    """Run the fused MLP Pallas kernel.

    x:              (batch, n_input) float32
    padded_params:  [W0(in_pad,out_pad) bf16, b0(1,out_pad) f32, ...] from
                    prepare_params(); all feature dims padded to multiples of 128.
    """
    batch, n_input = x.shape
    in_pad = padded_params[0].shape[0]
    out_pad = padded_params[-1].shape[-1]

    # Batch tile: multiple of the f32 sublane (8), capped at block_batch.
    tb = min(block_batch, _round_up(batch, _SUBLANE))
    batch_pad = _round_up(batch, tb)

    # Pad batch + features once, cast activations to bf16 for the MXU.
    x_p = jnp.zeros((batch_pad, in_pad), jnp.bfloat16)
    x_p = x_p.at[:batch, :n_input].set(x.astype(jnp.bfloat16))

    grid = (batch_pad // tb,)

    # x / out are tiled over the batch grid; weights & biases get constant
    # block indices so they stay resident in VMEM for every grid step.
    in_specs = [pl.BlockSpec((tb, in_pad), lambda i: (i, 0))]
    for p in padded_params:
        in_specs.append(pl.BlockSpec(p.shape, lambda i: (0, 0)))
    out_specs = pl.BlockSpec((tb, out_pad), lambda i: (i, 0))

    # VMEM budget: resident weights/biases + double-buffered x (bf16) and out
    # (f32) tiles, with 2x headroom for intermediates; clamp to the scoped
    # limit that is safe on all of v5e/v6e/v7x.
    weight_bytes = sum(int(p.size) * p.dtype.itemsize for p in padded_params)
    act_bytes = 2 * tb * in_pad * 2 + 2 * tb * out_pad * 4
    vmem_limit = int(min(max(2 * (weight_bytes + act_bytes) + (4 << 20), 16 << 20),
                         32 << 20))

    kernel = _make_mlp_kernel(num_hidden_layers, n_output)

    out = pl.pallas_call(
        kernel,
        out_shape=jax.ShapeDtypeStruct((batch_pad, out_pad), jnp.float32),
        grid=grid,
        in_specs=in_specs,
        out_specs=out_specs,
        compiler_params=pltpu.CompilerParams(
            dimension_semantics=("parallel",),   # shard batch tiles across TCs (v7x)
            vmem_limit_bytes=vmem_limit,
        ),
    )(x_p, *padded_params)

    return out[:batch, :n_output]


def init_network_params(key, n_input, n_output, hiddens):
    """Deterministic init mirroring nn.Linear: W (out, in), b (out,), U(-1/sqrt(fan_in))."""
    sizes = [n_input] + list(hiddens) + [n_output]
    params = []
    for fan_in, fan_out in zip(sizes[:-1], sizes[1:]):
        key, kw, kb = jax.random.split(key, 3)
        bound = 1.0 / float(fan_in) ** 0.5
        w = jax.random.uniform(kw, (fan_out, fan_in), jnp.float32, -bound, bound)
        b = jax.random.uniform(kb, (fan_out,), jnp.float32, -bound, bound)
        params.append((w, b))
    return params


def prepare_params(torch_layout_params):
    """Transpose W to (in, out), zero-pad features to 128 lanes, cast W to bf16."""
    flat = []
    for w, b in torch_layout_params:
        fan_out, fan_in = w.shape
        in_pad = _round_up(fan_in, _LANE)
        out_pad = _round_up(fan_out, _LANE)
        w_p = jnp.zeros((in_pad, out_pad), jnp.bfloat16)
        w_p = w_p.at[:fan_in, :fan_out].set(w.T.astype(jnp.bfloat16))
        b_p = jnp.zeros((1, out_pad), jnp.float32)
        b_p = b_p.at[0, :fan_out].set(b)
        flat.append(w_p)
        flat.append(b_p)
    return flat


def reference_forward(x, padded_params, num_hidden_layers, n_output):
    """Pure-JAX reference with identical numerics (bf16 matmuls, f32 accum, eval dropout)."""
    n_input = x.shape[1]
    in_pad = padded_params[0].shape[0]
    h = jnp.zeros((x.shape[0], in_pad), jnp.float32).at[:, :n_input].set(x)
    h = h.astype(jnp.bfloat16)
    for i in range(num_hidden_layers):
        w = padded_params[2 * i]
        b = padded_params[2 * i + 1]
        a = jnp.dot(h, w, preferred_element_type=jnp.float32) + b
        h = jnp.maximum(a, 0.0).astype(jnp.bfloat16)
    w = padded_params[2 * num_hidden_layers]
    b = padded_params[2 * num_hidden_layers + 1]
    logits = jnp.dot(h, w, preferred_element_type=jnp.float32) + b
    return jax.nn.log_softmax(logits[:, :n_output], axis=1)


if __name__ == "__main__":
    # Small shapes implied by the module: x is (batch, n_input)
    batch = 8
    n_input = 32
    hiddens = [64, 32]
    n_output = 16

    key = jax.random.PRNGKey(0)
    key, kx = jax.random.split(key)
    x = jax.random.normal(kx, (batch, n_input), jnp.float32)

    torch_params = init_network_params(key, n_input, n_output, hiddens)
    padded_params = prepare_params(torch_params)

    out = mlp_forward(x, padded_params,
                      num_hidden_layers=len(hiddens), n_output=n_output)
    out = jax.block_until_ready(out)

    ref = reference_forward(x, padded_params, len(hiddens), n_output)
    assert out.shape == (batch, n_output)
    assert jnp.allclose(out, ref, atol=1e-3, rtol=1e-3), "mismatch vs reference"
    # rows of log_softmax should exp-sum to 1
    assert jnp.allclose(jnp.sum(jnp.exp(out), axis=1), 1.0, atol=1e-4)

    print("KERNEL_OK")
</pallas_src>

<mosaic_0001>
module attributes {stable_mosaic.version = 11 : i64} {
  func.func @kernel(%arg0: i32, %arg1: memref<8x128xbf16, #tpu.memory_space<vmem>>, %arg2: memref<128x128xbf16, #tpu.memory_space<vmem>>, %arg3: memref<1x128xf32, #tpu.memory_space<vmem>>, %arg4: memref<128x128xbf16, #tpu.memory_space<vmem>>, %arg5: memref<1x128xf32, #tpu.memory_space<vmem>>, %arg6: memref<128x128xbf16, #tpu.memory_space<vmem>>, %arg7: memref<1x128xf32, #tpu.memory_space<vmem>>, %arg8: memref<8x128xf32, #tpu.memory_space<vmem>>) attributes {dimension_semantics = [#tpu.dimension_semantics<parallel>], iteration_bounds = array<i64: 1>, scalar_prefetch = 0 : i64, scratch_operands = 0 : i64, tpu.core_type = #tpu.core_type<tc>, window_params = [{transform_indices = @transform_0, window_bounds = array<i64: 8, 128>}, {pipeline_mode = #tpu.pipeline_mode<synchronous>, transform_indices = @transform_1, window_bounds = array<i64: 128, 128>}, {pipeline_mode = #tpu.pipeline_mode<synchronous>, transform_indices = @transform_2, window_bounds = array<i64: 1, 128>}, {pipeline_mode = #tpu.pipeline_mode<synchronous>, transform_indices = @transform_3, window_bounds = array<i64: 128, 128>}, {pipeline_mode = #tpu.pipeline_mode<synchronous>, transform_indices = @transform_4, window_bounds = array<i64: 1, 128>}, {pipeline_mode = #tpu.pipeline_mode<synchronous>, transform_indices = @transform_5, window_bounds = array<i64: 128, 128>}, {pipeline_mode = #tpu.pipeline_mode<synchronous>, transform_indices = @transform_6, window_bounds = array<i64: 1, 128>}, {transform_indices = @transform_7, window_bounds = array<i64: 8, 128>}]} {
    %c0 = arith.constant 0 : index
    %c0_0 = arith.constant 0 : index
    %0 = vector.load %arg1[%c0, %c0_0] : memref<8x128xbf16, #tpu.memory_space<vmem>>, vector<8x128xbf16>
    %c0_1 = arith.constant 0 : index
    %c0_2 = arith.constant 0 : index
    %1 = vector.load %arg2[%c0_1, %c0_2] : memref<128x128xbf16, #tpu.memory_space<vmem>>, vector<128x128xbf16>
    %c0_3 = arith.constant 0 : index
    %c0_4 = arith.constant 0 : index
    %2 = vector.load %arg3[%c0_3, %c0_4] : memref<1x128xf32, #tpu.memory_space<vmem>>, vector<1x128xf32>
    %cst = arith.constant dense<0.000000e+00> : vector<8x128xf32>
    %3 = tpu.matmul %0, %1, %cst {dimension_numbers = #tpu.dot_dimension_numbers<[1], [0], [0], [1], [0, 0, 1, 1], [], []>} : vector<8x128xbf16>, vector<128x128xbf16>, vector<8x128xf32> -> vector<8x128xf32>
    %4 = vector.broadcast %2 : vector<1x128xf32> to vector<8x128xf32>
    %5 = arith.addf %3, %4 : vector<8x128xf32>
    %cst_5 = arith.constant 0.000000e+00 : f32
    %6 = vector.broadcast %cst_5 : f32 to vector<8x128xf32>
    %7 = arith.maximumf %5, %6 : vector<8x128xf32>
    %8 = arith.truncf %7 : vector<8x128xf32> to vector<8x128xbf16>
    %c0_6 = arith.constant 0 : index
    %c0_7 = arith.constant 0 : index
    %9 = vector.load %arg4[%c0_6, %c0_7] : memref<128x128xbf16, #tpu.memory_space<vmem>>, vector<128x128xbf16>
    %c0_8 = arith.constant 0 : index
    %c0_9 = arith.constant 0 : index
    %10 = vector.load %arg5[%c0_8, %c0_9] : memref<1x128xf32, #tpu.memory_space<vmem>>, vector<1x128xf32>
    %cst_10 = arith.constant dense<0.000000e+00> : vector<8x128xf32>
    %11 = tpu.matmul %8, %9, %cst_10 {dimension_numbers = #tpu.dot_dimension_numbers<[1], [0], [0], [1], [0, 0, 1, 1], [], []>} : vector<8x128xbf16>, vector<128x128xbf16>, vector<8x128xf32> -> vector<8x128xf32>
    %12 = vector.broadcast %10 : vector<1x128xf32> to vector<8x128xf32>
    %13 = arith.addf %11, %12 : vector<8x128xf32>
    %cst_11 = arith.constant 0.000000e+00 : f32
    %14 = vector.broadcast %cst_11 : f32 to vector<8x128xf32>
    %15 = arith.maximumf %13, %14 : vector<8x128xf32>
    %16 = arith.truncf %15 : vector<8x128xf32> to vector<8x128xbf16>
    %c0_12 = arith.constant 0 : index
    %c0_13 = arith.constant 0 : index
    %17 = vector.load %arg6[%c0_12, %c0_13] : memref<128x128xbf16, #tpu.memory_space<vmem>>, vector<128x128xbf16>
    %c0_14 = arith.constant 0 : index
    %c0_15 = arith.constant 0 : index
    %18 = vector.load %arg7[%c0_14, %c0_15] : memref<1x128xf32, #tpu.memory_space<vmem>>, vector<1x128xf32>
    %cst_16 = arith.constant dense<0.000000e+00> : vector<8x128xf32>
    %19 = tpu.matmul %16, %17, %cst_16 {dimension_numbers = #tpu.dot_dimension_numbers<[1], [0], [0], [1], [0, 0, 1, 1], [], []>} : vector<8x128xbf16>, vector<128x128xbf16>, vector<8x128xf32> -> vector<8x128xf32>
    %20 = vector.broadcast %18 : vector<1x128xf32> to vector<8x128xf32>
    %21 = arith.addf %19, %20 : vector<8x128xf32>
    %22 = tpu.iota {dimensions = array<i32: 1>} : vector<8x128xi32>
    %c16_i32 = arith.constant 16 : i32
    %23 = vector.broadcast %c16_i32 : i32 to vector<8x128xi32>
    %24 = arith.cmpi slt, %22, %23 : vector<8x128xi32>
    %cst_17 = arith.constant -1.000000e+30 : f32
    %25 = vector.broadcast %cst_17 : f32 to vector<8x128xf32>
    %26 = arith.select %24, %21, %25 : vector<8x128xi1>, vector<8x128xf32>
    %cst_18 = arith.constant dense<0xFF800000> : vector<8xf32>
    %27 = vector.multi_reduction <maximumf>, %26, %cst_18 [1] : vector<8x128xf32> to vector<8xf32>
    %28 = vector.shape_cast %27 : vector<8xf32> to vector<8x1xf32>
    %29 = vector.broadcast %28 : vector<8x1xf32> to vector<8x128xf32>
    %30 = arith.subf %26, %29 : vector<8x128xf32>
    %31 = math.exp %30 : vector<8x128xf32>
    %cst_19 = arith.constant 0.000000e+00 : f32
    %32 = vector.broadcast %cst_19 : f32 to vector<8x128xf32>
    %33 = arith.select %24, %31, %32 : vector<8x128xi1>, vector<8x128xf32>
    %cst_20 = arith.constant dense<0.000000e+00> : vector<8xf32>
    %34 = vector.multi_reduction <add>, %33, %cst_20 [1] : vector<8x128xf32> to vector<8xf32>
    %35 = vector.shape_cast %34 : vector<8xf32> to vector<8x1xf32>
    %36 = math.log %35 : vector<8x1xf32>
    %37 = vector.broadcast %36 : vector<8x1xf32> to vector<8x128xf32>
    %38 = arith.subf %30, %37 : vector<8x128xf32>
    %c0_21 = arith.constant 0 : index
    %c0_22 = arith.constant 0 : index
    %39 = vector.load %arg8[%c0_21, %c0_22] : memref<8x128xf32, #tpu.memory_space<vmem>>, vector<8x128xf32>
    tpu.vector_store %arg8[%c0_21, %c0_22], %38 {strides = array<i32>} : memref<8x128xf32, #tpu.memory_space<vmem>>, vector<8x128xf32>,
    return
  }
  func.func @transform_0(%arg0: i32) -> (i32, i32) {
    %c0_i32 = arith.constant 0 : i32
    %c0_i32_0 = arith.constant 0 : i32
    return %arg0, %c0_i32 : i32, i32
  }
  func.func @transform_1(%arg0: i32) -> (i32, i32) {
    %c0_i32 = arith.constant 0 : i32
    %c0_i32_0 = arith.constant 0 : i32
    %c0_i32_1 = arith.constant 0 : i32
    return %c0_i32, %c0_i32_0 : i32, i32
  }
  func.func @transform_2(%arg0: i32) -> (i32, i32) {
    %c0_i32 = arith.constant 0 : i32
    %c0_i32_0 = arith.constant 0 : i32
    %c0_i32_1 = arith.constant 0 : i32
    return %c0_i32, %c0_i32_0 : i32, i32
  }
  func.func @transform_3(%arg0: i32) -> (i32, i32) {
    %c0_i32 = arith.constant 0 : i32
    %c0_i32_0 = arith.constant 0 : i32
    %c0_i32_1 = arith.constant 0 : i32
    return %c0_i32, %c0_i32_0 : i32, i32
  }
  func.func @transform_4(%arg0: i32) -> (i32, i32) {
    %c0_i32 = arith.constant 0 : i32
    %c0_i32_0 = arith.constant 0 : i32
    %c0_i32_1 = arith.constant 0 : i32
    return %c0_i32, %c0_i32_0 : i32, i32
  }
  func.func @transform_5(%arg0: i32) -> (i32, i32) {
    %c0_i32 = arith.constant 0 : i32
    %c0_i32_0 = arith.constant 0 : i32
    %c0_i32_1 = arith.constant 0 : i32
    return %c0_i32, %c0_i32_0 : i32, i32
  }
  func.func @transform_6(%arg0: i32) -> (i32, i32) {
    %c0_i32 = arith.constant 0 : i32
    %c0_i32_0 = arith.constant 0 : i32
    %c0_i32_1 = arith.constant 0 : i32
    return %c0_i32, %c0_i32_0 : i32, i32
  }
  func.func @transform_7(%arg0: i32) -> (i32, i32) {
    %c0_i32 = arith.constant 0 : i32
    %c0_i32_0 = arith.constant 0 : i32
    return %arg0, %c0_i32 : i32, i32
  }
}

</mosaic_0001>

<llo_original>
// kernel: mlp_forward.1
$region0: #{mlp_forward.1}
  #allocation0 [shape = 'u32[]', space=smem, size = 0x4, offset = 0x4, fixed_abs, tag = 'smem constant byte address 0x4 - core index']
  #allocation1 [shape = 'u32[144,128]{1,0:T(1,128)}', space=vmem, size = 0x12000, scoped, tag = 'internal scratch']
  %s0 = inlined_call_operand.vmem [shape: bf16[8,128], index: 0, kind: input, shape index: {}]
  %s1 = inlined_call_operand.hbm [shape: bf16[128,128], index: 1, kind: input, shape index: {}]
  %s2 = inlined_call_operand.vmem [shape: f32[1,128], index: 2, kind: input, shape index: {}]
  %s3 = inlined_call_operand.hbm [shape: bf16[128,128], index: 3, kind: input, shape index: {}]
  %s4 = inlined_call_operand.vmem [shape: f32[1,128], index: 4, kind: input, shape index: {}]
  %s5 = inlined_call_operand.hbm [shape: bf16[128,128], index: 5, kind: input, shape index: {}]
  %s6 = inlined_call_operand.vmem [shape: f32[1,128], index: 6, kind: input, shape index: {}]
  %s7 = inlined_call_operand.hbm [shape: f32[8,128], index: 7, kind: output, shape index: {}]
  %s8 = sld [smem:[#allocation0]]
  $region50: #{mlp_forward.1} parent=0
    _
  %s10 = ssub.s32 1, %s8
  %s11 = scalar_select 0, %s10, %s8
  $region1: #{mlp_forward.1} parent=0
    #allocation2 [shape = 'u8[32768]{0}', space=vmem, size = 0x8000, scoped, tag = 'input window, operand 1, single buffered']
    #allocation3 [shape = 's32[1]{0}', space=sflag, size = 0x4, scoped, tag = 'scoped memory for mlp_forward.1']
    #allocation4 [shape = 's32[1]{0}', space=sflag, size = 0x4, scoped, tag = 'scoped memory for mlp_forward.1']
    #allocation5 [shape = 'u8[32768]{0}', space=vmem, size = 0x8000, scoped, tag = 'input window, operand 3, single buffered']
    #allocation6 [shape = 's32[1]{0}', space=sflag, size = 0x4, scoped, tag = 'scoped memory for mlp_forward.1']
    #allocation7 [shape = 'u8[32768]{0}', space=vmem, size = 0x8000, scoped, tag = 'input window, operand 5, single buffered']
    #allocation8 [shape = 'u8[4096]{0}', space=vmem, size = 0x1000, scoped, tag = 'output window, operand 0, single buffered']
    %12 = vsyncpa [#allocation3], 0
    %13 = vsyncpa [#allocation6], 0
    %14 = vsyncpa [#allocation4], 0
    // Predicated region
    $region2: #{mlp_forward.1} parent=1 // pred_check
      _
    $region3: #{mlp_forward.1} parent=1 // pred_check_branch
      %16 = sbr.rel (0) target = $region5
    $region4: #{mlp_forward.1} parent=1 // pred_region
      _
    $region5: #{mlp_forward.1} parent=1 // pred_fallthru
      _
    // Predicated region
    $region6: #{mlp_forward.1} parent=1 // pred_check
      _
    $region7: #{mlp_forward.1} parent=1 // pred_check_branch
      %18 = sbr.rel (0) target = $region9
    $region8: #{mlp_forward.1} parent=1 // pred_region
      %s20 = ssub.s32 1024, 1024
      %21 = vsyncadd [#allocation3], %s20
      %s22 = sshll.u32 [#allocation2], 4
      %s23 = int_to_ptr.vmem [resolvable:$true] %s22
      %28 = dma.hbm_to_vmem [thread:$0]  %s1, 1024, %s23, [#allocation3], 64, 64, 4
    $region9: #{mlp_forward.1} parent=1 // pred_fallthru
      _
    // Predicated region
    $region10: #{mlp_forward.1} parent=1 // pred_check
      _
    $region11: #{mlp_forward.1} parent=1 // pred_check_branch
      %30 = sbr.rel (0) target = $region13
    $region12: #{mlp_forward.1} parent=1 // pred_region
      _
    $region13: #{mlp_forward.1} parent=1 // pred_fallthru
      _
    // Predicated region
    $region14: #{mlp_forward.1} parent=1 // pred_check
      _
    $region15: #{mlp_forward.1} parent=1 // pred_check_branch
      %32 = sbr.rel (0) target = $region17
    $region16: #{mlp_forward.1} parent=1 // pred_region
      %s34 = ssub.s32 1024, 1024
      %35 = vsyncadd [#allocation6], %s34
      %s36 = sshll.u32 [#allocation5], 4
      %s37 = int_to_ptr.vmem [resolvable:$true] %s36
      %42 = dma.hbm_to_vmem [thread:$0]  %s3, 1024, %s37, [#allocation6], 64, 64, 4
    $region17: #{mlp_forward.1} parent=1 // pred_fallthru
      _
    // Predicated region
    $region18: #{mlp_forward.1} parent=1 // pred_check
      _
    $region19: #{mlp_forward.1} parent=1 // pred_check_branch
      %44 = sbr.rel (0) target = $region21
    $region20: #{mlp_forward.1} parent=1 // pred_region
      _
    $region21: #{mlp_forward.1} parent=1 // pred_fallthru
      _
    // Predicated region
    $region22: #{mlp_forward.1} parent=1 // pred_check
      _
    $region23: #{mlp_forward.1} parent=1 // pred_check_branch
      %46 = sbr.rel (0) target = $region25
    $region24: #{mlp_forward.1} parent=1 // pred_region
      %s48 = ssub.s32 1024, 1024
      %49 = vsyncadd [#allocation6], %s48
      %s50 = sshll.u32 [#allocation7], 4
      %s51 = int_to_ptr.vmem [resolvable:$true] %s50
      %56 = dma.hbm_to_vmem [thread:$0]  %s5, 1024, %s51, [#allocation6], 64, 64, 4
    $region25: #{mlp_forward.1} parent=1 // pred_fallthru
      _
    // Predicated region
    $region26: #{mlp_forward.1} parent=1 // pred_check
      _
    $region27: #{mlp_forward.1} parent=1 // pred_check_branch
      %58 = sbr.rel (0) target = $region29
    $region28: #{mlp_forward.1} parent=1 // pred_region
      _
    $region29: #{mlp_forward.1} parent=1 // pred_fallthru
      _
    // Predicated region
    $region30: #{mlp_forward.1} parent=1 // pred_check
      _
    $region31: #{mlp_forward.1} parent=1 // pred_check_branch
      %60 = sbr.rel (0) target = $region33
    $region32: #{mlp_forward.1} parent=1 // pred_region
      %61 = dma.done [#allocation3], 1024
    $region33: #{mlp_forward.1} parent=1 // pred_fallthru
      _
    // Predicated region
    $region34: #{mlp_forward.1} parent=1 // pred_check
      _
    $region35: #{mlp_forward.1} parent=1 // pred_check_branch
      %63 = sbr.rel (0) target = $region37
    $region36: #{mlp_forward.1} parent=1 // pred_region
      %64 = dma.done [#allocation6], 1024
    $region37: #{mlp_forward.1} parent=1 // pred_fallthru
      _
    // Predicated region
    $region38: #{mlp_forward.1} parent=1 // pred_check
      _
    $region39: #{mlp_forward.1} parent=1 // pred_check_branch
      %66 = sbr.rel (0) target = $region41
    $region40: #{mlp_forward.1} parent=1 // pred_region
      %67 = dma.done [#allocation6], 1024
    $region41: #{mlp_forward.1} parent=1 // pred_fallthru
      _
    %v69 = vld [vmem:[%s0] sm:$0xf]
    %v70 = vld [vmem:[#allocation2] sm:$0xf]
    %v71 = vld [vmem:[#allocation2 + $0x4] sm:$0xf]
    %v72 = vld [vmem:[#allocation2 + $0x8] sm:$0xf]
    %v73 = vld [vmem:[#allocation2 + $0xc] sm:$0xf]
    %v74 = vld [vmem:[#allocation2 + $0x10] sm:$0xf]
    %v75 = vld [vmem:[#allocation2 + $0x14] sm:$0xf]
    %v76 = vld [vmem:[#allocation2 + $0x18] sm:$0xf]
    %v77 = vld [vmem:[#allocation2 + $0x1c] sm:$0xf]
    %v78 = vld [vmem:[#allocation2 + $0x20] sm:$0xf]
    %v79 = vld [vmem:[#allocation2 + $0x24] sm:$0xf]
    %v80 = vld [vmem:[#allocation2 + $0x28] sm:$0xf]
    %v81 = vld [vmem:[#allocation2 + $0x2c] sm:$0xf]
    %v82 = vld [vmem:[#allocation2 + $0x30] sm:$0xf]
    %v83 = vld [vmem:[#allocation2 + $0x34] sm:$0xf]
    %v84 = vld [vmem:[#allocation2 + $0x38] sm:$0xf]
    %v85 = vld [vmem:[#allocation2 + $0x3c] sm:$0xf]
    %v86 = vld [vmem:[%s2] sm:$0x1]
    %v88 = vlaneseq
    %v89 = vshrl.u32 %v88, 7
    %v90 = vsub.s32 0, %v89
    %v91 = vrot.slane %v86, %v90
    %v109 = vunpack.c.l.b16 %v70
    %v110 = vunpack.c.l.b16 %v71
    %v111 = vunpack.c.l.b16 %v72
    %v112 = vunpack.c.l.b16 %v73
    %v113 = vunpack.c.l.b16 %v74
    %v114 = vunpack.c.l.b16 %v75
    %v115 = vunpack.c.l.b16 %v76
    %v116 = vunpack.c.l.b16 %v77
    %v117 = vunpack.c.l.b16 %v78
    %v118 = vunpack.c.l.b16 %v79
    %v119 = vunpack.c.l.b16 %v80
    %v120 = vunpack.c.l.b16 %v81
    %v121 = vunpack.c.l.b16 %v82
    %v122 = vunpack.c.l.b16 %v83
    %v123 = vunpack.c.l.b16 %v84
    %v124 = vunpack.c.l.b16 %v85
    %v125 = vpack.c.b16 %v110, %v109
    %v126 = vpack.c.b16 %v112, %v111
    %v127 = vpack.c.b16 %v114, %v113
    %v128 = vpack.c.b16 %v116, %v115
    %v129 = vpack.c.b16 %v118, %v117
    %v130 = vpack.c.b16 %v120, %v119
    %v131 = vpack.c.b16 %v122, %v121
    %v132 = vpack.c.b16 %v124, %v123
    %141 = vmatprep.subr.bf16.mxu0 0
    %142 = vmatpush1.bf16.msra.mxu0 %v125
    %143 = vmatprep.subr.bf16.mxu0 0
    %144 = vmatpush1.bf16.msra.mxu0 %v126
    %145 = vmatprep.subr.bf16.mxu0 0
    %146 = vmatpush1.bf16.msra.mxu0 %v127
    %147 = vmatprep.subr.bf16.mxu0 0
    %148 = vmatpush1.bf16.msra.mxu0 %v128
    %149 = vmatprep.subr.bf16.mxu0 0
    %150 = vmatpush1.bf16.msra.mxu0 %v129
    %151 = vmatprep.subr.bf16.mxu0 0
    %152 = vmatpush1.bf16.msra.mxu0 %v130
    %153 = vmatprep.subr.bf16.mxu0 0
    %154 = vmatpush1.bf16.msra.mxu0 %v131
    %155 = vmatprep.subr.bf16.mxu0 0
    %156 = vmatpush1.bf16.msra.mxu0 %v132
    %157 = vmatprep.subr.bf16.mxu0 0
    %158 = vmatpush1.bf16.msra.mxu0 0
    %159 = vmatprep.subr.bf16.mxu0 0
    %160 = vmatpush1.bf16.msra.mxu0 0
    %161 = vmatprep.subr.bf16.mxu0 0
    %162 = vmatpush1.bf16.msra.mxu0 0
    %163 = vmatprep.subr.bf16.mxu0 0
    %164 = vmatpush1.bf16.msra.mxu0 0
    %165 = vmatprep.subr.bf16.mxu0 0
    %166 = vmatpush1.bf16.msra.mxu0 0
    %167 = vmatprep.subr.bf16.mxu0 0
    %168 = vmatpush1.bf16.msra.mxu0 0
    %169 = vmatprep.subr.bf16.mxu0 0
    %170 = vmatpush1.bf16.msra.mxu0 0
    %171 = vmatprep.subr.bf16.mxu0 0
    %172 = vmatpush1.bf16.msra.mxu0 0
    %173 = vmatprep.mubr.bf16.mxu0 0
    %174 = vmatmul.mubr.bf16.gmra.mrb[0].mxu0 %v69
    %v175 = vpop.f32.mrb[0].mxu0
    %v176 = vadd.f32 %v91, %v175
    %v177 = vpop.f32.mrb[0].mxu0
    %v178 = vpop.f32.mrb[0].mxu0
    %v179 = vpop.f32.mrb[0].mxu0
    %180 = vdwg.mxu0
    %v181 = vmax.f32 %v176, 0.0
    %v182 = vpack.c.bf16 %v181, %v181
    %v183 = vld [vmem:[#allocation5] sm:$0xf]
    %v184 = vld [vmem:[#allocation5 + $0x4] sm:$0xf]
    %v185 = vld [vmem:[#allocation5 + $0x8] sm:$0xf]
    %v186 = vld [vmem:[#allocation5 + $0xc] sm:$0xf]
    %v187 = vld [vmem:[#allocation5 + $0x10] sm:$0xf]
    %v188 = vld [vmem:[#allocation5 + $0x14] sm:$0xf]
    %v189 = vld [vmem:[#allocation5 + $0x18] sm:$0xf]
    %v190 = vld [vmem:[#allocation5 + $0x1c] sm:$0xf]
    %v191 = vld [vmem:[#allocation5 + $0x20] sm:$0xf]
    %v192 = vld [vmem:[#allocation5 + $0x24] sm:$0xf]
    %v193 = vld [vmem:[#allocation5 + $0x28] sm:$0xf]
    %v194 = vld [vmem:[#allocation5 + $0x2c] sm:$0xf]
    %v195 = vld [vmem:[#allocation5 + $0x30] sm:$0xf]
    %v196 = vld [vmem:[#allocation5 + $0x34] sm:$0xf]
    %v197 = vld [vmem:[#allocation5 + $0x38] sm:$0xf]
    %v198 = vld [vmem:[#allocation5 + $0x3c] sm:$0xf]
    %v199 = vld [vmem:[%s4] sm:$0x1]
    %v201 = vlaneseq
    %v202 = vshrl.u32 %v201, 7
    %v203 = vsub.s32 0, %v202
    %v204 = vrot.slane %v199, %v203
    %v222 = vunpack.c.l.b16 %v183
    %v223 = vunpack.c.l.b16 %v184
    %v224 = vunpack.c.l.b16 %v185
    %v225 = vunpack.c.l.b16 %v186
    %v226 = vunpack.c.l.b16 %v187
    %v227 = vunpack.c.l.b16 %v188
    %v228 = vunpack.c.l.b16 %v189
    %v229 = vunpack.c.l.b16 %v190
    %v230 = vunpack.c.l.b16 %v191
    %v231 = vunpack.c.l.b16 %v192
    %v232 = vunpack.c.l.b16 %v193
    %v233 = vunpack.c.l.b16 %v194
    %v234 = vunpack.c.l.b16 %v195
    %v235 = vunpack.c.l.b16 %v196
    %v236 = vunpack.c.l.b16 %v197
    %v237 = vunpack.c.l.b16 %v198
    %v238 = vpack.c.b16 %v223, %v222
    %v239 = vpack.c.b16 %v225, %v224
    %v240 = vpack.c.b16 %v227, %v226
    %v241 = vpack.c.b16 %v229, %v228
    %v242 = vpack.c.b16 %v231, %v230
    %v243 = vpack.c.b16 %v233, %v232
    %v244 = vpack.c.b16 %v235, %v234
    %v245 = vpack.c.b16 %v237, %v236
    %254 = vmatprep.subr.bf16.mxu0 0
    %255 = vmatpush1.bf16.msra.mxu0 %v238
    %256 = vmatprep.subr.bf16.mxu0 0
    %257 = vmatpush1.bf16.msra.mxu0 %v239
    %258 = vmatprep.subr.bf16.mxu0 0
    %259 = vmatpush1.bf16.msra.mxu0 %v240
    %260 = vmatprep.subr.bf16.mxu0 0
    %261 = vmatpush1.bf16.msra.mxu0 %v241
    %262 = vmatprep.subr.bf16.mxu0 0
    %263 = vmatpush1.bf16.msra.mxu0 %v242
    %264 = vmatprep.subr.bf16.mxu0 0
    %265 = vmatpush1.bf16.msra.mxu0 %v243
    %266 = vmatprep.subr.bf16.mxu0 0
    %267 = vmatpush1.bf16.msra.mxu0 %v244
    %268 = vmatprep.subr.bf16.mxu0 0
    %269 = vmatpush1.bf16.msra.mxu0 %v245
    %270 = vmatprep.subr.bf16.mxu0 0
    %271 = vmatpush1.bf16.msra.mxu0 0
    %272 = vmatprep.subr.bf16.mxu0 0
    %273 = vmatpush1.bf16.msra.mxu0 0
    %274 = vmatprep.subr.bf16.mxu0 0
    %275 = vmatpush1.bf16.msra.mxu0 0
    %276 = vmatprep.subr.bf16.mxu0 0
    %277 = vmatpush1.bf16.msra.mxu0 0
    %278 = vmatprep.subr.bf16.mxu0 0
    %279 = vmatpush1.bf16.msra.mxu0 0
    %280 = vmatprep.subr.bf16.mxu0 0
    %281 = vmatpush1.bf16.msra.mxu0 0
    %282 = vmatprep.subr.bf16.mxu0 0
    %283 = vmatpush1.bf16.msra.mxu0 0
    %284 = vmatprep.subr.bf16.mxu0 0
    %285 = vmatpush1.bf16.msra.mxu0 0
    %286 = vmatprep.mubr.bf16.mxu0 0
    %287 = vmatmul.mubr.bf16.gmra.mrb[0].mxu0 %v182
    %v288 = vpop.f32.mrb[0].mxu0
    %v289 = vadd.f32 %v204, %v288
    %v290 = vpop.f32.mrb[0].mxu0
    %v291 = vpop.f32.mrb[0].mxu0
    %v292 = vpop.f32.mrb[0].mxu0
    %293 = vdwg.mxu0
    %v294 = vmax.f32 %v289, 0.0
    %v295 = vpack.c.bf16 %v294, %v294
    %v296 = vld [vmem:[#allocation7] sm:$0xf]
    %v297 = vld [vmem:[#allocation7 + $0x4] sm:$0xf]
    %v298 = vld [vmem:[#allocation7 + $0x8] sm:$0xf]
    %v299 = vld [vmem:[#allocation7 + $0xc] sm:$0xf]
    %v300 = vld [vmem:[#allocation7 + $0x10] sm:$0xf]
    %v301 = vld [vmem:[#allocation7 + $0x14] sm:$0xf]
    %v302 = vld [vmem:[#allocation7 + $0x18] sm:$0xf]
    %v303 = vld [vmem:[#allocation7 + $0x1c] sm:$0xf]
    %v304 = vld [vmem:[#allocation7 + $0x20] sm:$0xf]
    %v305 = vld [vmem:[#allocation7 + $0x24] sm:$0xf]
    %v306 = vld [vmem:[#allocation7 + $0x28] sm:$0xf]
    %v307 = vld [vmem:[#allocation7 + $0x2c] sm:$0xf]
    %v308 = vld [vmem:[#allocation7 + $0x30] sm:$0xf]
    %v309 = vld [vmem:[#allocation7 + $0x34] sm:$0xf]
    %v310 = vld [vmem:[#allocation7 + $0x38] sm:$0xf]
    %v311 = vld [vmem:[#allocation7 + $0x3c] sm:$0xf]
    %v312 = vld [vmem:[%s6] sm:$0x1]
    %v314 = vlaneseq
    %v315 = vshrl.u32 %v314, 7
    %v316 = vsub.s32 0, %v315
    %v317 = vrot.slane %v312, %v316
    %v335 = vunpack.c.l.b16 %v296
    %v336 = vunpack.c.l.b16 %v297
    %v337 = vunpack.c.l.b16 %v298
    %v338 = vunpack.c.l.b16 %v299
    %v339 = vunpack.c.l.b16 %v300
    %v340 = vunpack.c.l.b16 %v301
    %v341 = vunpack.c.l.b16 %v302
    %v342 = vunpack.c.l.b16 %v303
    %v343 = vunpack.c.l.b16 %v304
    %v344 = vunpack.c.l.b16 %v305
    %v345 = vunpack.c.l.b16 %v306
    %v346 = vunpack.c.l.b16 %v307
    %v347 = vunpack.c.l.b16 %v308
    %v348 = vunpack.c.l.b16 %v309
    %v349 = vunpack.c.l.b16 %v310
    %v350 = vunpack.c.l.b16 %v311
    %v351 = vpack.c.b16 %v336, %v335
    %v352 = vpack.c.b16 %v338, %v337
    %v353 = vpack.c.b16 %v340, %v339
    %v354 = vpack.c.b16 %v342, %v341
    %v355 = vpack.c.b16 %v344, %v343
    %v356 = vpack.c.b16 %v346, %v345
    %v357 = vpack.c.b16 %v348, %v347
    %v358 = vpack.c.b16 %v350, %v349
    %367 = vmatprep.subr.bf16.mxu0 0
    %368 = vmatpush1.bf16.msra.mxu0 %v351
    %369 = vmatprep.subr.bf16.mxu0 0
    %370 = vmatpush1.bf16.msra.mxu0 %v352
    %371 = vmatprep.subr.bf16.mxu0 0
    %372 = vmatpush1.bf16.msra.mxu0 %v353
    %373 = vmatprep.subr.bf16.mxu0 0
    %374 = vmatpush1.bf16.msra.mxu0 %v354
    %375 = vmatprep.subr.bf16.mxu0 0
    %376 = vmatpush1.bf16.msra.mxu0 %v355
    %377 = vmatprep.subr.bf16.mxu0 0
    %378 = vmatpush1.bf16.msra.mxu0 %v356
    %379 = vmatprep.subr.bf16.mxu0 0
    %380 = vmatpush1.bf16.msra.mxu0 %v357
    %381 = vmatprep.subr.bf16.mxu0 0
    %382 = vmatpush1.bf16.msra.mxu0 %v358
    %383 = vmatprep.subr.bf16.mxu0 0
    %384 = vmatpush1.bf16.msra.mxu0 0
    %385 = vmatprep.subr.bf16.mxu0 0
    %386 = vmatpush1.bf16.msra.mxu0 0
    %387 = vmatprep.subr.bf16.mxu0 0
    %388 = vmatpush1.bf16.msra.mxu0 0
    %389 = vmatprep.subr.bf16.mxu0 0
    %390 = vmatpush1.bf16.msra.mxu0 0
    %391 = vmatprep.subr.bf16.mxu0 0
    %392 = vmatpush1.bf16.msra.mxu0 0
    %393 = vmatprep.subr.bf16.mxu0 0
    %394 = vmatpush1.bf16.msra.mxu0 0
    %395 = vmatprep.subr.bf16.mxu0 0
    %396 = vmatpush1.bf16.msra.mxu0 0
    %397 = vmatprep.subr.bf16.mxu0 0
    %398 = vmatpush1.bf16.msra.mxu0 0
    %399 = vmatprep.mubr.bf16.mxu0 0
    %400 = vmatmul.mubr.bf16.gmra.mrb[0].mxu0 %v295
    %v401 = vpop.f32.mrb[0].mxu0
    %v402 = vadd.f32 %v317, %v401
    %v403 = vpop.f32.mrb[0].mxu0
    %v404 = vpop.f32.mrb[0].mxu0
    %v405 = vpop.f32.mrb[0].mxu0
    %406 = vdwg.mxu0
    %v407 = vlaneseq
    %v408 = vand.u32 %v407, 127
    %vm409 = vcmp.lt.s32.totalorder %v408, 16
    %v410 = vsel %vm409, %v402, -1e+30
    %411 = vmax.xlane.f32.xlu0 %v410
    %v412 = vpop.xlane.xlu0 %411
    %v413 = vsub.f32 %v410, %v412
    %v414 = vmul.f32 %v413, 1.442695
    %v415 = vpow.pop %v414
    %v416 = vsel %vm409, %v415, 0.0
    %417 = vadd.xlane.f32.xlu0 %v416
    %v418 = vpop.xlane.xlu0 %417
    %v419 = vlog2.pop %v418
    %v420 = vmul.f32 %v419, 0.6931472
    %v421 = vsub.f32 %v413, %v420
    %422 = vst [vmem:[#allocation8] sm:$0xff] %v421
    // Predicated region
    $region42: #{mlp_forward.1} parent=1 // pred_check
      _
    $region43: #{mlp_forward.1} parent=1 // pred_check_branch
      %424 = sbr.rel (0) target = $region45
    $region44: #{mlp_forward.1} parent=1 // pred_region
      %s426 = ssub.s32 128, 128
      %427 = vsyncadd [#allocation4], %s426
      %s429 = sshll.u32 [#allocation8], 4
      %s430 = int_to_ptr.vmem [resolvable:$true] %s429
      %432 = dma.vmem_to_hbm [thread:$0]  %s430, 128, %s7, [#allocation4]
    $region45: #{mlp_forward.1} parent=1 // pred_fallthru
      _
    // Predicated region
    $region46: #{mlp_forward.1} parent=1 // pred_check
      _
    $region47: #{mlp_forward.1} parent=1 // pred_check_branch
      %434 = sbr.rel (0) target = $region49
    $region48: #{mlp_forward.1} parent=1 // pred_region
      %435 = dma.done [#allocation4], 128
    $region49: #{mlp_forward.1} parent=1 // pred_fallthru
      _
    %436 = vsyncpa [#allocation3], 1
    %437 = vsyncpa [#allocation6], 1
    %438 = vsyncpa [#allocation4], 1

</llo_original>
